<compile_context>
chip_gen: v6e
topology: v6e:2x2x1
jax: 0.10.0
libtpu: 0.0.40
codegen_flags: <defaults>
</compile_context>

<pallas_src>
import functools

import jax
import jax.numpy as jnp
from jax.experimental import pallas as pl
from jax.experimental.pallas import tpu as pltpu


_VMEM_LIMIT = 32 * 1024 * 1024  # safe scoped-VMEM limit on v5e/v6e/v7x


def _tile(dim, target, align):
    """Largest tile <= target that divides dim and is a multiple of align,
    else the full dim (full-dim blocks are always legal)."""
    if dim <= target:
        return dim
    t = (target // align) * align
    while t >= align:
        if dim % t == 0:
            return t
        t -= align
    return dim


# ---------------------------------------------------------------------------
# Pallas kernels
# ---------------------------------------------------------------------------

def _matmul_bias_kernel(x_ref, w_ref, b_ref, o_ref, acc_ref, *, activation):
    # o = act(x @ w + b), tiled over (M, N, K); K is the reduction axis (last).
    @pl.when(pl.program_id(2) == 0)
    def _():
        acc_ref[...] = jnp.broadcast_to(b_ref[...], acc_ref.shape)

    acc_ref[...] += jnp.dot(x_ref[...], w_ref[...],
                            preferred_element_type=jnp.float32)

    @pl.when(pl.program_id(2) == pl.num_programs(2) - 1)
    def _():
        r = acc_ref[...]
        if activation == "gelu":
            r = jax.nn.gelu(r)
        o_ref[...] = r.astype(o_ref.dtype)


def matmul_bias(x, w, b, activation=None, out_dtype=jnp.bfloat16,
                tm=256, tn=256, tk=512):
    """x:(M,K) bf16, w:(K,N) bf16, b:(N,) f32 -> (M,N) out_dtype."""
    M, K = x.shape
    N = w.shape[1]
    tm = _tile(M, tm, 8)
    tn = _tile(N, tn, 128)
    tk = _tile(K, tk, 128)
    kern = functools.partial(_matmul_bias_kernel, activation=activation)
    return pl.pallas_call(
        kern,
        out_shape=jax.ShapeDtypeStruct((M, N), out_dtype),
        grid_spec=pltpu.PrefetchScalarGridSpec(
            num_scalar_prefetch=0,
            grid=(M // tm, N // tn, K // tk),
            in_specs=[
                pl.BlockSpec((tm, tk), lambda i, j, k: (i, k)),
                pl.BlockSpec((tk, tn), lambda i, j, k: (k, j)),
                pl.BlockSpec((1, tn), lambda i, j, k: (0, j)),
            ],
            out_specs=pl.BlockSpec((tm, tn), lambda i, j, k: (i, j)),
            scratch_shapes=[pltpu.VMEM((tm, tn), jnp.float32)],
        ),
        compiler_params=pltpu.CompilerParams(
            dimension_semantics=("parallel", "parallel", "arbitrary"),
            vmem_limit_bytes=_VMEM_LIMIT),
    )(x, w, b.reshape(1, N))


def _matmul_res_ln_kernel(x_ref, w_ref, b_ref, r_ref, g_ref, be_ref,
                          o_ref, acc_ref):
    # o = LayerNorm((x @ w + b) + residual), full H kept in one tile so LN can
    # be fused on the final reduction step.
    @pl.when(pl.program_id(1) == 0)
    def _():
        acc_ref[...] = jnp.broadcast_to(b_ref[...], acc_ref.shape)

    acc_ref[...] += jnp.dot(x_ref[...], w_ref[...],
                            preferred_element_type=jnp.float32)

    @pl.when(pl.program_id(1) == pl.num_programs(1) - 1)
    def _():
        h = acc_ref[...] + r_ref[...].astype(jnp.float32)
        mu = jnp.mean(h, axis=-1, keepdims=True)
        var = jnp.mean(jnp.square(h - mu), axis=-1, keepdims=True)
        y = (h - mu) * jax.lax.rsqrt(var + 1e-12) * g_ref[...] + be_ref[...]
        o_ref[...] = y.astype(o_ref.dtype)


def matmul_bias_res_ln(x, w, b, residual, gamma, beta,
                       out_dtype=jnp.bfloat16, tm=256, tk=512):
    """x:(M,K) bf16, w:(K,H) bf16, residual:(M,H) -> LN(x@w+b+res) (M,H)."""
    M, K = x.shape
    H = w.shape[1]
    tm = _tile(M, tm, 8)
    tk = _tile(K, tk, 128)
    return pl.pallas_call(
        _matmul_res_ln_kernel,
        out_shape=jax.ShapeDtypeStruct((M, H), out_dtype),
        grid_spec=pltpu.PrefetchScalarGridSpec(
            num_scalar_prefetch=0,
            grid=(M // tm, K // tk),
            in_specs=[
                pl.BlockSpec((tm, tk), lambda i, k: (i, k)),
                pl.BlockSpec((tk, H), lambda i, k: (k, 0)),
                pl.BlockSpec((1, H), lambda i, k: (0, 0)),
                pl.BlockSpec((tm, H), lambda i, k: (i, 0)),
                pl.BlockSpec((1, H), lambda i, k: (0, 0)),
                pl.BlockSpec((1, H), lambda i, k: (0, 0)),
            ],
            out_specs=pl.BlockSpec((tm, H), lambda i, k: (i, 0)),
            scratch_shapes=[pltpu.VMEM((tm, H), jnp.float32)],
        ),
        compiler_params=pltpu.CompilerParams(
            dimension_semantics=("parallel", "arbitrary"),
            vmem_limit_bytes=_VMEM_LIMIT),
    )(x, w, b.reshape(1, H), residual, gamma.reshape(1, H), beta.reshape(1, H))


def _layernorm_kernel(x_ref, g_ref, b_ref, o_ref):
    x = x_ref[...].astype(jnp.float32)
    mu = jnp.mean(x, axis=-1, keepdims=True)
    var = jnp.mean(jnp.square(x - mu), axis=-1, keepdims=True)
    y = (x - mu) * jax.lax.rsqrt(var + 1e-12) * g_ref[...] + b_ref[...]
    o_ref[...] = y.astype(o_ref.dtype)


def layernorm(x, gamma, beta, out_dtype=jnp.bfloat16, tm=512):
    M, H = x.shape
    tm = _tile(M, tm, 8)
    return pl.pallas_call(
        _layernorm_kernel,
        out_shape=jax.ShapeDtypeStruct((M, H), out_dtype),
        grid_spec=pltpu.PrefetchScalarGridSpec(
            num_scalar_prefetch=0,
            grid=(M // tm,),
            in_specs=[
                pl.BlockSpec((tm, H), lambda i: (i, 0)),
                pl.BlockSpec((1, H), lambda i: (0, 0)),
                pl.BlockSpec((1, H), lambda i: (0, 0)),
            ],
            out_specs=pl.BlockSpec((tm, H), lambda i: (i, 0)),
        ),
        compiler_params=pltpu.CompilerParams(
            dimension_semantics=("parallel",),
            vmem_limit_bytes=_VMEM_LIMIT),
    )(x, gamma.reshape(1, H), beta.reshape(1, H))


def _attention_kernel(q_ref, k_ref, v_ref, m_ref, o_ref, *, n_heads, d_head):
    # One batch element per grid step; all heads processed here; q/k/v/o are
    # lane-dense (L, H) blocks (H = n_heads * d_head).
    scale = 1.0 / float(d_head) ** 0.5
    q = q_ref[...]
    k = k_ref[...]
    v = v_ref[...]
    m = m_ref[...]                                   # (1, L) additive key mask
    ctxs = []
    for h in range(n_heads):
        lo = h * d_head
        hi = lo + d_head
        qh = q[:, lo:hi]
        kh = k[:, lo:hi]
        vh = v[:, lo:hi]
        # scores: contract the head dim of both operands (MXU, f32 acc)
        s = jax.lax.dot_general(qh, kh, (((1,), (1,)), ((), ())),
                                preferred_element_type=jnp.float32)
        s = s * scale + m
        s_max = jnp.max(s, axis=-1, keepdims=True)
        e = jnp.exp(s - s_max)
        denom = jnp.sum(e, axis=-1, keepdims=True)
        p = e * pl.reciprocal(denom, approx=True)    # divide on the EUP slot
        ctxs.append(jnp.dot(p.astype(vh.dtype), vh,
                            preferred_element_type=jnp.float32))
    o_ref[...] = jnp.concatenate(ctxs, axis=-1).astype(o_ref.dtype)


def attention(q, k, v, add_mask, n_heads):
    """q/k/v:(B,L,H) bf16, add_mask:(B,1,L) f32 -> (B,L,H) bf16."""
    B, L, H = q.shape
    d_head = H // n_heads
    kern = functools.partial(_attention_kernel, n_heads=n_heads, d_head=d_head)
    qkv_spec = pl.BlockSpec((pl.Squeezed(), L, H), lambda b: (b, 0, 0))
    return pl.pallas_call(
        kern,
        out_shape=jax.ShapeDtypeStruct((B, L, H), jnp.bfloat16),
        grid_spec=pltpu.PrefetchScalarGridSpec(
            num_scalar_prefetch=0,
            grid=(B,),
            in_specs=[qkv_spec, qkv_spec, qkv_spec,
                      pl.BlockSpec((pl.Squeezed(), 1, L), lambda b: (b, 0, 0))],
            out_specs=pl.BlockSpec((pl.Squeezed(), L, H), lambda b: (b, 0, 0)),
        ),
        compiler_params=pltpu.CompilerParams(
            dimension_semantics=("parallel",),
            vmem_limit_bytes=_VMEM_LIMIT),
    )(q, k, v, add_mask)


def _pool_kernel(p_ref, h_ref, o_ref):
    # subword -> word mean pooling as a matmul:  (S, L) @ (L, H) -> (S, H)
    o_ref[...] = jnp.dot(p_ref[...], h_ref[...],
                         preferred_element_type=jnp.float32).astype(o_ref.dtype)


def word_pool(P, hidden):
    B, S, L = P.shape
    H = hidden.shape[2]
    return pl.pallas_call(
        _pool_kernel,
        out_shape=jax.ShapeDtypeStruct((B, S, H), jnp.float32),
        grid_spec=pltpu.PrefetchScalarGridSpec(
            num_scalar_prefetch=0,
            grid=(B,),
            in_specs=[
                pl.BlockSpec((pl.Squeezed(), S, L), lambda b: (b, 0, 0)),
                pl.BlockSpec((pl.Squeezed(), L, H), lambda b: (b, 0, 0)),
            ],
            out_specs=pl.BlockSpec((pl.Squeezed(), S, H), lambda b: (b, 0, 0)),
        ),
        compiler_params=pltpu.CompilerParams(
            dimension_semantics=("parallel",),
            vmem_limit_bytes=_VMEM_LIMIT),
    )(P, hidden)


# ---------------------------------------------------------------------------
# Glue: pooling-matrix construction (reproduces bert[bert_mask].split(lens),
# per-span mean, and masked_scatter_, assuming sum(bert_lens[b]) equals the
# number of masked subwords in row b, as in real usage).
# ---------------------------------------------------------------------------

def build_pool_matrix(bert_lens, bert_mask):
    lens = bert_lens.astype(jnp.int32)                        # (B, S)
    mask = bert_mask > 0                                      # (B, L)
    rank = jnp.cumsum(mask.astype(jnp.int32), axis=1) - 1     # rank of masked subword
    start = jnp.cumsum(lens, axis=1) - lens                   # exclusive cumsum (B, S)
    end = start + lens
    in_span = (
        (rank[:, None, :] >= start[:, :, None])
        & (rank[:, None, :] < end[:, :, None])
        & mask[:, None, :]
    )                                                         # (B, S, L)
    inv_len = jnp.where(lens > 0,
                        1.0 / jnp.maximum(lens, 1).astype(jnp.float32), 0.0)
    return in_span.astype(jnp.float32) * inv_len[:, :, None]


# ---------------------------------------------------------------------------
# Synthetic BERT encoder + BertEmbedding.forward
# ---------------------------------------------------------------------------

def init_params(key, vocab, max_pos, H, nH, F, n_layers=1):
    def norm(k, shape):
        return 0.02 * jax.random.normal(k, shape, dtype=jnp.float32)

    keys = jax.random.split(key, 3 + 4 * n_layers)
    params = {
        "word_emb": norm(keys[0], (vocab, H)),
        "pos_emb": norm(keys[1], (max_pos, H)),
        "type_emb": norm(keys[2], (2, H)),
        "emb_ln_g": jnp.ones((H,), jnp.float32),
        "emb_ln_b": jnp.zeros((H,), jnp.float32),
        "layers": [],
    }
    ki = 3
    for _ in range(n_layers):
        lyr = {
            # fused Q|K|V projection
            "wqkv": norm(keys[ki + 0], (H, 3 * H)).astype(jnp.bfloat16),
            "bqkv": jnp.zeros((3 * H,), jnp.float32),
            "wo": norm(keys[ki + 1], (H, H)).astype(jnp.bfloat16),
            "bo": jnp.zeros((H,), jnp.float32),
            "attn_ln_g": jnp.ones((H,), jnp.float32),
            "attn_ln_b": jnp.zeros((H,), jnp.float32),
            "wi": norm(keys[ki + 2], (H, F)).astype(jnp.bfloat16),
            "bi": jnp.zeros((F,), jnp.float32),
            "wf": norm(keys[ki + 3], (F, H)).astype(jnp.bfloat16),
            "bf": jnp.zeros((H,), jnp.float32),
            "ffn_ln_g": jnp.ones((H,), jnp.float32),
            "ffn_ln_b": jnp.zeros((H,), jnp.float32),
        }
        ki += 4
        params["layers"].append(lyr)
    return params


def bert_embedding_forward(params, subwords, bert_lens, bert_mask, nH=4):
    B, L = subwords.shape
    H = params["word_emb"].shape[1]
    M = B * L

    # --- BERT embeddings (lookup = glue, LN = Pallas) ---
    x_emb = (
        params["word_emb"][subwords]
        + params["pos_emb"][jnp.arange(L)][None, :, :]
        + params["type_emb"][0][None, None, :]
    ).astype(jnp.float32)
    x = layernorm(x_emb.reshape(M, H), params["emb_ln_g"], params["emb_ln_b"])
    # x: (M, H) bf16

    # additive attention mask (bert_mask.gt(0) semantics), (B, 1, L)
    add_mask = jnp.where(bert_mask > 0, 0.0, -1e9).astype(jnp.float32)
    add_mask = add_mask.reshape(B, 1, L)

    # --- transformer encoder layers ---
    for lyr in params["layers"]:
        # fused QKV projection (one matmul, bias fused)
        qkv = matmul_bias(x, lyr["wqkv"], lyr["bqkv"])         # (M, 3H) bf16
        qkv = qkv.reshape(B, L, 3 * H)
        q, k, v = qkv[..., :H], qkv[..., H:2 * H], qkv[..., 2 * H:]

        ctx = attention(q, k, v, add_mask, n_heads=nH)         # (B, L, H) bf16

        # output projection + residual + LayerNorm, fused
        x = matmul_bias_res_ln(ctx.reshape(M, H), lyr["wo"], lyr["bo"],
                               x, lyr["attn_ln_g"], lyr["attn_ln_b"])

        # FFN: matmul + bias + GELU fused, then matmul + residual + LN fused
        ff = matmul_bias(x, lyr["wi"], lyr["bi"], activation="gelu")  # (M, F)
        x = matmul_bias_res_ln(ff, lyr["wf"], lyr["bf"],
                               x, lyr["ffn_ln_g"], lyr["ffn_ln_b"])

    hidden = x.reshape(B, L, H)                                # (B, L_sub, H) bf16

    # --- bert[bert_mask].split(lens) -> per-span mean -> masked_scatter_ ---
    S = bert_lens.shape[1]
    P = build_pool_matrix(bert_lens, bert_mask)                # (B, S, L) f32
    S_pad = ((S + 7) // 8) * 8                                 # sublane-align S
    if S_pad != S:
        P = jnp.pad(P, ((0, 0), (0, S_pad - S), (0, 0)))
    bert_embed = word_pool(P.astype(jnp.bfloat16), hidden)     # (B, S_pad, H) f32
    return bert_embed[:, :S, :]


# ---------------------------------------------------------------------------

if __name__ == "__main__":
    B, S, L, H, nH, F, vocab = 2, 8, 16, 32, 4, 64, 50

    key = jax.random.PRNGKey(0)
    kp, ks = jax.random.split(key)
    params = init_params(kp, vocab=vocab, max_pos=L, H=H, nH=nH, F=F, n_layers=1)

    subwords = jax.random.randint(ks, (B, L), 0, vocab, dtype=jnp.int32)

    # per-word subword counts; sum per row matches the number of masked subwords
    bert_lens = jnp.array(
        [[2, 1, 3, 1, 2, 1, 0, 0],
         [1, 2, 1, 0, 2, 0, 0, 0]], dtype=jnp.int32)
    mask0 = jnp.zeros((L,), jnp.int32).at[1:11].set(1)   # 10 masked subwords
    mask1 = jnp.zeros((L,), jnp.int32).at[1:7].set(1)    # 6 masked subwords
    bert_mask = jnp.stack([mask0, mask1])                # (B, L)

    out = bert_embedding_forward(params, subwords, bert_lens, bert_mask, nH=nH)
    out = jax.block_until_ready(out)
    assert out.shape == (B, S, H) and out.dtype == jnp.float32
    assert bool(jnp.all(jnp.isfinite(out)))
    print("KERNEL_OK")
</pallas_src>

<mosaic_0001>
module attributes {stable_mosaic.version = 11 : i64} {
  func.func @_layernorm_kernel(%arg0: i32, %arg1: memref<32x32xf32, #tpu.memory_space<vmem>>, %arg2: memref<1x32xf32, #tpu.memory_space<vmem>>, %arg3: memref<1x32xf32, #tpu.memory_space<vmem>>, %arg4: memref<32x32xbf16, #tpu.memory_space<vmem>>) attributes {dimension_semantics = [#tpu.dimension_semantics<parallel>], iteration_bounds = array<i64: 1>, scalar_prefetch = 0 : i64, scratch_operands = 0 : i64, tpu.core_type = #tpu.core_type<tc>, window_params = [{transform_indices = @transform_0, window_bounds = array<i64: 32, 32>}, {pipeline_mode = #tpu.pipeline_mode<synchronous>, transform_indices = @transform_1, window_bounds = array<i64: 1, 32>}, {pipeline_mode = #tpu.pipeline_mode<synchronous>, transform_indices = @transform_2, window_bounds = array<i64: 1, 32>}, {transform_indices = @transform_3, window_bounds = array<i64: 32, 32>}]} {
    %c0 = arith.constant 0 : index
    %c0_0 = arith.constant 0 : index
    %0 = vector.load %arg1[%c0, %c0_0] : memref<32x32xf32, #tpu.memory_space<vmem>>, vector<32x32xf32>
    %cst = arith.constant dense<0.000000e+00> : vector<32xf32>
    %1 = vector.multi_reduction <add>, %0, %cst [1] : vector<32x32xf32> to vector<32xf32>
    %2 = vector.shape_cast %1 : vector<32xf32> to vector<32x1xf32>
    %cst_1 = arith.constant 3.200000e+01 : f32
    %3 = vector.broadcast %cst_1 : f32 to vector<32x1xf32>
    %4 = arith.divf %2, %3 : vector<32x1xf32>
    %5 = vector.broadcast %4 : vector<32x1xf32> to vector<32x32xf32>
    %6 = arith.subf %0, %5 : vector<32x32xf32>
    %7 = arith.mulf %6, %6 : vector<32x32xf32>
    %cst_2 = arith.constant dense<0.000000e+00> : vector<32xf32>
    %8 = vector.multi_reduction <add>, %7, %cst_2 [1] : vector<32x32xf32> to vector<32xf32>
    %9 = vector.shape_cast %8 : vector<32xf32> to vector<32x1xf32>
    %cst_3 = arith.constant 3.200000e+01 : f32
    %10 = vector.broadcast %cst_3 : f32 to vector<32x1xf32>
    %11 = arith.divf %9, %10 : vector<32x1xf32>
    %12 = vector.broadcast %4 : vector<32x1xf32> to vector<32x32xf32>
    %13 = arith.subf %0, %12 : vector<32x32xf32>
    %cst_4 = arith.constant 9.99999996E-13 : f32
    %14 = vector.broadcast %cst_4 : f32 to vector<32x1xf32>
    %15 = arith.addf %11, %14 : vector<32x1xf32>
    %16 = math.rsqrt %15 : vector<32x1xf32>
    %17 = vector.broadcast %16 : vector<32x1xf32> to vector<32x32xf32>
    %18 = arith.mulf %13, %17 : vector<32x32xf32>
    %c0_5 = arith.constant 0 : index
    %c0_6 = arith.constant 0 : index
    %19 = vector.load %arg2[%c0_5, %c0_6] : memref<1x32xf32, #tpu.memory_space<vmem>>, vector<1x32xf32>
    %20 = vector.broadcast %19 : vector<1x32xf32> to vector<32x32xf32>
    %21 = arith.mulf %18, %20 : vector<32x32xf32>
    %c0_7 = arith.constant 0 : index
    %c0_8 = arith.constant 0 : index
    %22 = vector.load %arg3[%c0_7, %c0_8] : memref<1x32xf32, #tpu.memory_space<vmem>>, vector<1x32xf32>
    %23 = vector.broadcast %22 : vector<1x32xf32> to vector<32x32xf32>
    %24 = arith.addf %21, %23 : vector<32x32xf32>
    %25 = arith.truncf %24 : vector<32x32xf32> to vector<32x32xbf16>
    %c0_9 = arith.constant 0 : index
    %c0_10 = arith.constant 0 : index
    %26 = vector.load %arg4[%c0_9, %c0_10] : memref<32x32xbf16, #tpu.memory_space<vmem>>, vector<32x32xbf16>
    tpu.vector_store %arg4[%c0_9, %c0_10], %25 {strides = array<i32>} : memref<32x32xbf16, #tpu.memory_space<vmem>>, vector<32x32xbf16>,
    return
  }
  func.func @transform_0(%arg0: i32) -> (i32, i32) {
    %c0_i32 = arith.constant 0 : i32
    %c0_i32_0 = arith.constant 0 : i32
    return %arg0, %c0_i32 : i32, i32
  }
  func.func @transform_1(%arg0: i32) -> (i32, i32) {
    %c0_i32 = arith.constant 0 : i32
    %c0_i32_0 = arith.constant 0 : i32
    %c0_i32_1 = arith.constant 0 : i32
    return %c0_i32, %c0_i32_0 : i32, i32
  }
  func.func @transform_2(%arg0: i32) -> (i32, i32) {
    %c0_i32 = arith.constant 0 : i32
    %c0_i32_0 = arith.constant 0 : i32
    %c0_i32_1 = arith.constant 0 : i32
    return %c0_i32, %c0_i32_0 : i32, i32
  }
  func.func @transform_3(%arg0: i32) -> (i32, i32) {
    %c0_i32 = arith.constant 0 : i32
    %c0_i32_0 = arith.constant 0 : i32
    return %arg0, %c0_i32 : i32, i32
  }
}

</mosaic_0001>

<llo_original>
// kernel: tpu_custom_call.1
$region0: #{tpu_custom_call.1}
  #allocation0 [shape = 'u32[]', space=smem, size = 0x4, offset = 0x4, fixed_abs, tag = 'smem constant byte address 0x4 - core index']
  #allocation1 [shape = 'u32[144,128]{1,0:T(1,128)}', space=vmem, size = 0x12000, scoped, tag = 'internal scratch']
  %s0 = inlined_call_operand.hbm [shape: f32[32,32], index: 0, kind: input, shape index: {}]
  %s1 = inlined_call_operand.vmem [shape: f32[1,32], index: 1, kind: input, shape index: {}]
  %s2 = inlined_call_operand.vmem [shape: f32[1,32], index: 2, kind: input, shape index: {}]
  %s3 = inlined_call_operand.hbm [shape: bf16[32,32], index: 3, kind: output, shape index: {}]
  %s4 = sld [smem:[#allocation0]]
  $region26: #{tpu_custom_call.1} parent=0
    _
  %s6 = ssub.s32 1, %s4
  %s7 = scalar_select 0, %s6, %s4
  $region1: #{tpu_custom_call.1} parent=0
    #allocation2 [shape = 'u8[16384]{0}', space=vmem, size = 0x4000, scoped, tag = 'input window, operand 0, single buffered']
    #allocation3 [shape = 's32[1]{0}', space=sflag, size = 0x4, scoped, tag = 'scoped memory for tpu_custom_call.1']
    #allocation4 [shape = 's32[1]{0}', space=sflag, size = 0x4, scoped, tag = 'scoped memory for tpu_custom_call.1']
    #allocation5 [shape = 'u8[8192]{0}', space=vmem, size = 0x2000, scoped, tag = 'output window, operand 0, single buffered']
    %8 = vsyncpa [#allocation3], 0
    %9 = vsyncpa [#allocation4], 0
    // Predicated region
    $region2: #{tpu_custom_call.1} parent=1 // pred_check
      _
    $region3: #{tpu_custom_call.1} parent=1 // pred_check_branch
      %11 = sbr.rel (0) target = $region5
    $region4: #{tpu_custom_call.1} parent=1 // pred_region
      %s13 = ssub.s32 512, 512
      %14 = vsyncadd [#allocation3], %s13
      %s15 = sshll.u32 [#allocation2], 4
      %s16 = int_to_ptr.vmem [resolvable:$true] %s15
      %21 = dma.hbm_to_vmem [thread:$0]  %s0, 512, %s16, [#allocation3], 128, 128, 8
    $region5: #{tpu_custom_call.1} parent=1 // pred_fallthru
      _
    // Predicated region
    $region6: #{tpu_custom_call.1} parent=1 // pred_check
      _
    $region7: #{tpu_custom_call.1} parent=1 // pred_check_branch
      %23 = sbr.rel (0) target = $region9
    $region8: #{tpu_custom_call.1} parent=1 // pred_region
      _
    $region9: #{tpu_custom_call.1} parent=1 // pred_fallthru
      _
    // Predicated region
    $region10: #{tpu_custom_call.1} parent=1 // pred_check
      _
    $region11: #{tpu_custom_call.1} parent=1 // pred_check_branch
      %25 = sbr.rel (0) target = $region13
    $region12: #{tpu_custom_call.1} parent=1 // pred_region
      _
    $region13: #{tpu_custom_call.1} parent=1 // pred_fallthru
      _
    // Predicated region
    $region14: #{tpu_custom_call.1} parent=1 // pred_check
      _
    $region15: #{tpu_custom_call.1} parent=1 // pred_check_branch
      %27 = sbr.rel (0) target = $region17
    $region16: #{tpu_custom_call.1} parent=1 // pred_region
      %28 = dma.done [#allocation3], 512
    $region17: #{tpu_custom_call.1} parent=1 // pred_fallthru
      _
    %v29 = vld [vmem:[#allocation2] sm:$0xff]
    %v30 = vld [vmem:[#allocation2 + $0x8] sm:$0xff]
    %v31 = vld [vmem:[#allocation2 + $0x10] sm:$0xff]
    %v32 = vld [vmem:[#allocation2 + $0x18] sm:$0xff]
    %vm33 = vcmask 261120
    %v34 = vsel %vm33, %v29, 0.0
    %35 = vadd.xlane.f32.xlu0 %v34
    %v36 = vpop.xlane.xlu0 %35
    %v37 = vsel %vm33, %v30, 0.0
    %38 = vadd.xlane.f32.xlu0 %v37
    %v39 = vpop.xlane.xlu0 %38
    %v40 = vsel %vm33, %v31, 0.0
    %41 = vadd.xlane.f32.xlu0 %v40
    %v42 = vpop.xlane.xlu0 %41
    %v43 = vsel %vm33, %v32, 0.0
    %44 = vadd.xlane.f32.xlu0 %v43
    %v45 = vpop.xlane.xlu0 %44
    %v46 = vrcp.pop 32.0
    %v47 = vmul.f32 %v36, %v46
    %v48 = vmul.f32 %v39, %v46
    %v49 = vmul.f32 %v42, %v46
    %v50 = vmul.f32 %v45, %v46
    %v51 = vsub.f32 %v29, %v47
    %v52 = vsub.f32 %v30, %v48
    %v53 = vsub.f32 %v31, %v49
    %v54 = vsub.f32 %v32, %v50
    %v55 = vmul.f32 %v51, %v51
    %v56 = vmul.f32 %v52, %v52
    %v57 = vmul.f32 %v53, %v53
    %v58 = vmul.f32 %v54, %v54
    %v59 = vsel %vm33, %v55, 0.0
    %60 = vadd.xlane.f32.xlu0 %v59
    %v61 = vpop.xlane.xlu0 %60
    %v62 = vsel %vm33, %v56, 0.0
    %63 = vadd.xlane.f32.xlu0 %v62
    %v64 = vpop.xlane.xlu0 %63
    %v65 = vsel %vm33, %v57, 0.0
    %66 = vadd.xlane.f32.xlu0 %v65
    %v67 = vpop.xlane.xlu0 %66
    %v68 = vsel %vm33, %v58, 0.0
    %69 = vadd.xlane.f32.xlu0 %v68
    %v70 = vpop.xlane.xlu0 %69
    %v71 = vmul.f32 %v61, %v46
    %v72 = vmul.f32 %v64, %v46
    %v73 = vmul.f32 %v67, %v46
    %v74 = vmul.f32 %v70, %v46
    %v75 = vadd.f32 %v71, 1e-12
    %v76 = vadd.f32 %v72, 1e-12
    %v77 = vadd.f32 %v73, 1e-12
    %v78 = vadd.f32 %v74, 1e-12
    %v79 = vrsqrt.pop %v75
    %v80 = vrsqrt.pop %v76
    %v81 = vrsqrt.pop %v77
    %v82 = vrsqrt.pop %v78
    %v83 = vmul.f32 %v51, %v79
    %v84 = vmul.f32 %v52, %v80
    %v85 = vmul.f32 %v53, %v81
    %v86 = vmul.f32 %v54, %v82
    %v87 = vld [vmem:[%s1] sm:$0x1]
    %v89 = vlaneseq
    %v90 = vshrl.u32 %v89, 7
    %v91 = vsub.s32 0, %v90
    %v92 = vrot.slane %v87, %v91
    %v94 = vmul.f32 %v83, %v92
    %v95 = vmul.f32 %v84, %v92
    %v96 = vmul.f32 %v85, %v92
    %v97 = vmul.f32 %v86, %v92
    %v98 = vld [vmem:[%s2] sm:$0x1]
    %v100 = vlaneseq
    %v101 = vshrl.u32 %v100, 7
    %v102 = vsub.s32 0, %v101
    %v103 = vrot.slane %v98, %v102
    %v105 = vadd.f32 %v94, %v103
    %v106 = vadd.f32 %v95, %v103
    %v107 = vadd.f32 %v96, %v103
    %v108 = vadd.f32 %v97, %v103
    %v109 = vpack.c.bf16 %v106, %v105
    %v110 = vpack.c.bf16 %v108, %v107
    %v113 = vunpack.c.l.b16 %v109
    %v114 = vunpack.c.h.b16 %v109
    %v115 = vunpack.c.l.b16 %v110
    %v116 = vunpack.c.h.b16 %v110
    %v117 = vpack.c.b16 %v113, %v113
    %v118 = vpack.c.b16 %v114, %v114
    %v119 = vpack.c.b16 %v115, %v115
    %v120 = vpack.c.b16 %v116, %v116
    %vm125 = vcmask 257024
    %126 = vst.msk [vmem:[#allocation5] sm:$0xf] %vm125, %v117
    %127 = vst.msk [vmem:[#allocation5 + $0x4] sm:$0xf] %vm125, %v118
    %128 = vst.msk [vmem:[#allocation5 + $0x8] sm:$0xf] %vm125, %v119
    %129 = vst.msk [vmem:[#allocation5 + $0xc] sm:$0xf] %vm125, %v120
    // Predicated region
    $region18: #{tpu_custom_call.1} parent=1 // pred_check
      _
    $region19: #{tpu_custom_call.1} parent=1 // pred_check_branch
      %131 = sbr.rel (0) target = $region21
    $region20: #{tpu_custom_call.1} parent=1 // pred_region
      %s133 = ssub.s32 256, 256
      %134 = vsyncadd [#allocation4], %s133
      %s135 = sshll.u32 [#allocation5], 4
      %s136 = int_to_ptr.vmem [resolvable:$true] %s135
      %141 = dma.vmem_to_hbm [thread:$0]  %s136, 256, %s3, [#allocation4], 64, 64, 4
    $region21: #{tpu_custom_call.1} parent=1 // pred_fallthru
      _
    // Predicated region
    $region22: #{tpu_custom_call.1} parent=1 // pred_check
      _
    $region23: #{tpu_custom_call.1} parent=1 // pred_check_branch
      %143 = sbr.rel (0) target = $region25
    $region24: #{tpu_custom_call.1} parent=1 // pred_region
      %144 = dma.done [#allocation4], 256
    $region25: #{tpu_custom_call.1} parent=1 // pred_fallthru
      _
    %145 = vsyncpa [#allocation3], 1
    %146 = vsyncpa [#allocation4], 1

</llo_original>
